<compile_context>
chip_gen: v7x
topology: tpu7x:2x2x1
jax: 0.10.0
libtpu: 0.0.40
codegen_flags: <defaults>
</compile_context>

<pallas_src>
import jax
import jax.numpy as jnp
from jax.experimental import pallas as pl
from jax.experimental.pallas import tpu as pltpu


_SMALL_PATH_BYTES = 8 << 20     # total in+out bytes <= 8 MiB -> single ungridded call
_TILED_VMEM_BUDGET = 12 << 20   # budget for double-buffered in+out tiles (auto tb)
_TILED_VMEM_LIMIT = 32 << 20    # scoped VMEM limit; safe on v5e/v6e/v7x


def _sublane_multiple(dtype) -> int:
    # Rows packed per sublane tile: 32-bit -> 8, 16-bit -> 16, 8-bit -> 32.
    return max(8, 32 // jnp.dtype(dtype).itemsize)


def _cat_slice_kernel(x1_ref, x2_ref, x3_ref, o_ref):
    # Pure load->store copy: each input is written directly into its lane
    # slice of the output; no intermediate concat buffer, no cross-lane shift.
    n1 = x1_ref.shape[1]
    n2 = x2_ref.shape[1]
    n3 = x3_ref.shape[1]
    o_ref[:, 0:n1] = x1_ref[...]
    o_ref[:, n1:n1 + n2] = x2_ref[...]
    if n3 > 2:  # static guard: skip degenerate zero-width store when n3 == 2
        o_ref[:, n1 + n2:n1 + n2 + (n3 - 2)] = x3_ref[:, :n3 - 2]
    # TODO(synk): `m = Model()` in the torch forward is a no-op module
    # construction with no compute; nothing to translate.


def cat_slice(x1, x2, x3, *, tb=None, force_tiled=False):
    assert x1.shape[0] == x2.shape[0] == x3.shape[0]
    assert x1.dtype == x2.dtype == x3.dtype
    B = x1.shape[0]
    n1, n2, n3 = x1.shape[1], x2.shape[1], x3.shape[1]
    assert n3 >= 2, "direct-slice rewrite assumes both dropped columns come from x3"
    F_out = n1 + n2 + n3 - 2
    dtype = x1.dtype
    itemsize = jnp.dtype(dtype).itemsize
    out_shape = jax.ShapeDtypeStruct((B, F_out), dtype)

    total_bytes = B * (n1 + n2 + n3 + F_out) * itemsize
    cost = pl.CostEstimate(flops=0, transcendentals=0, bytes_accessed=total_bytes)

    if not force_tiled and total_bytes <= _SMALL_PATH_BYTES:
        # Small problem: single ungridded call, whole arrays resident in VMEM.
        vmem = pl.BlockSpec(memory_space=pltpu.MemorySpace.VMEM)
        return pl.pallas_call(
            _cat_slice_kernel,
            out_shape=out_shape,
            in_specs=[vmem, vmem, vmem],
            out_specs=vmem,
            cost_estimate=cost,
        )(x1, x2, x3)

    # Large problem: tile the batch (sublane) axis so BlockSpec double-buffering
    # overlaps DMA with the copy; "parallel" shards the grid across v7x's 2 TCs.
    mult = _sublane_multiple(dtype)
    if tb is None:
        # Double-buffered bytes per row across all inputs + output.
        per_row = 2 * itemsize * (n1 + n2 + n3 + F_out)
        tb = max(512, (_TILED_VMEM_BUDGET // per_row) // 512 * 512)
    tb = max(mult, (tb // mult) * mult)
    if pl.cdiv(B, tb) < 2:
        # Keep at least 2 grid steps so both TensorCores (v7x) get work.
        tb = max(mult, (pl.cdiv(B, 2) + mult - 1) // mult * mult)
    grid = (pl.cdiv(B, tb),)

    return pl.pallas_call(
        _cat_slice_kernel,
        out_shape=out_shape,
        grid=grid,
        in_specs=[
            pl.BlockSpec((tb, n1), lambda i: (i, 0)),
            pl.BlockSpec((tb, n2), lambda i: (i, 0)),
            pl.BlockSpec((tb, n3), lambda i: (i, 0)),
        ],
        out_specs=pl.BlockSpec((tb, F_out), lambda i: (i, 0)),
        compiler_params=pltpu.CompilerParams(
            dimension_semantics=("parallel",),
            vmem_limit_bytes=_TILED_VMEM_LIMIT,
        ),
        cost_estimate=cost,
    )(x1, x2, x3)


if __name__ == "__main__":
    key = jax.random.PRNGKey(0)
    k1, k2, k3 = jax.random.split(key, 3)

    # Small shapes consistent with the forward: [batch, features].
    x1 = jax.random.normal(k1, (8, 32), dtype=jnp.float32)
    x2 = jax.random.normal(k2, (8, 32), dtype=jnp.float32)
    x3 = jax.random.normal(k3, (8, 32), dtype=jnp.float32)

    out = cat_slice(x1, x2, x3)
    jax.block_until_ready(out)
    ref = jnp.concatenate([x1, x2, x3], axis=1)[:, :-1][:, :-1]
    assert out.shape == ref.shape, (out.shape, ref.shape)
    assert jnp.allclose(out, ref), "mismatch vs reference (small path)"

    # Also exercise the batch-tiled path with a modest batch (tb=16 -> grid=(4,)).
    kb1, kb2, kb3 = jax.random.split(jax.random.PRNGKey(1), 3)
    y1 = jax.random.normal(kb1, (64, 32), dtype=jnp.float32)
    y2 = jax.random.normal(kb2, (64, 32), dtype=jnp.float32)
    y3 = jax.random.normal(kb3, (64, 32), dtype=jnp.float32)
    out2 = cat_slice(y1, y2, y3, tb=16, force_tiled=True)
    jax.block_until_ready(out2)
    ref2 = jnp.concatenate([y1, y2, y3], axis=1)[:, :-1][:, :-1]
    assert out2.shape == ref2.shape, (out2.shape, ref2.shape)
    assert jnp.allclose(out2, ref2), "mismatch vs reference (tiled path)"

    print("KERNEL_OK")
</pallas_src>

<mosaic_0001>
module attributes {stable_mosaic.version = 11 : i64} {
  func.func @_cat_slice_kernel(%arg0: memref<8x32xf32, #tpu.memory_space<vmem>>, %arg1: memref<8x32xf32, #tpu.memory_space<vmem>>, %arg2: memref<8x32xf32, #tpu.memory_space<vmem>>, %arg3: memref<8x94xf32, #tpu.memory_space<vmem>>) attributes {dimension_semantics = [], scalar_prefetch = 0 : i64, scratch_operands = 0 : i64, tpu.core_type = #tpu.core_type<tc>} {
    %c0 = arith.constant 0 : index
    %c0_0 = arith.constant 0 : index
    %0 = vector.load %arg0[%c0, %c0_0] : memref<8x32xf32, #tpu.memory_space<vmem>>, vector<8x32xf32>
    %c0_1 = arith.constant 0 : index
    %c0_2 = arith.constant 0 : index
    %1 = vector.load %arg3[%c0_1, %c0_2] : memref<8x94xf32, #tpu.memory_space<vmem>>, vector<8x32xf32>
    tpu.vector_store %arg3[%c0_1, %c0_2], %0 {strides = array<i32>} : memref<8x94xf32, #tpu.memory_space<vmem>>, vector<8x32xf32>,
    %c0_3 = arith.constant 0 : index
    %c0_4 = arith.constant 0 : index
    %2 = vector.load %arg1[%c0_3, %c0_4] : memref<8x32xf32, #tpu.memory_space<vmem>>, vector<8x32xf32>
    %c0_5 = arith.constant 0 : index
    %c32 = arith.constant 32 : index
    %3 = vector.load %arg3[%c0_5, %c32] : memref<8x94xf32, #tpu.memory_space<vmem>>, vector<8x32xf32>
    tpu.vector_store %arg3[%c0_5, %c32], %2 {strides = array<i32>} : memref<8x94xf32, #tpu.memory_space<vmem>>, vector<8x32xf32>,
    %c0_6 = arith.constant 0 : index
    %c0_7 = arith.constant 0 : index
    %4 = vector.load %arg2[%c0_6, %c0_7] : memref<8x32xf32, #tpu.memory_space<vmem>>, vector<8x30xf32>
    %c0_8 = arith.constant 0 : index
    %c64 = arith.constant 64 : index
    %5 = vector.load %arg3[%c0_8, %c64] : memref<8x94xf32, #tpu.memory_space<vmem>>, vector<8x30xf32>
    tpu.vector_store %arg3[%c0_8, %c64], %4 {strides = array<i32>} : memref<8x94xf32, #tpu.memory_space<vmem>>, vector<8x30xf32>,
    return
  }
}

</mosaic_0001>

<llo_original>
// kernel: tpu_custom_call.1
$region0: #{tpu_custom_call.1}
  #allocation0 [shape = 'u32[]', space=smem, size = 0x4, offset = 0x4, fixed_abs, tag = 'smem constant byte address 0x4 - core index']
  #allocation1 [shape = 'u32[144,128]{1,0:T(1,128)}', space=vmem, size = 0x12000, scoped, tag = 'internal scratch']
  %s0 = inlined_call_operand.hbm [shape: f32[8,32], index: 0, kind: input, shape index: {}]
  %s1 = inlined_call_operand.hbm [shape: f32[8,32], index: 1, kind: input, shape index: {}]
  %s2 = inlined_call_operand.hbm [shape: f32[8,32], index: 2, kind: input, shape index: {}]
  %s3 = inlined_call_operand.hbm [shape: f32[8,94], index: 3, kind: output, shape index: {}]
  %s4 = sld [smem:[#allocation0]]
  $region34: #{tpu_custom_call.1} parent=0
    _
  %s6 = ssub.s32 1, %s4
  %s7 = scalar_select 0, %s6, %s4
  $region1: #{tpu_custom_call.1} parent=0
    #allocation2 [shape = 'u8[4096]{0}', space=vmem, size = 0x1000, scoped, tag = 'input window, operand 0, single buffered']
    #allocation3 [shape = 's32[1]{0}', space=sflag, size = 0x4, scoped, tag = 'scoped memory for tpu_custom_call.1']
    #allocation4 [shape = 's32[1]{0}', space=sflag, size = 0x4, scoped, tag = 'scoped memory for tpu_custom_call.1']
    #allocation5 [shape = 'u8[4096]{0}', space=vmem, size = 0x1000, scoped, tag = 'input window, operand 1, single buffered']
    #allocation6 [shape = 's32[1]{0}', space=sflag, size = 0x4, scoped, tag = 'scoped memory for tpu_custom_call.1']
    #allocation7 [shape = 'u8[4096]{0}', space=vmem, size = 0x1000, scoped, tag = 'input window, operand 2, single buffered']
    #allocation8 [shape = 'u8[4096]{0}', space=vmem, size = 0x1000, scoped, tag = 'output window, operand 0, single buffered']
    %8 = vsyncpa [#allocation3], 0
    %9 = vsyncpa [#allocation6], 0
    %10 = vsyncpa [#allocation4], 0
    // Predicated region
    $region2: #{tpu_custom_call.1} parent=1 // pred_check
      _
    $region3: #{tpu_custom_call.1} parent=1 // pred_check_branch
      %12 = sbr.rel (0) target = $region5
    $region4: #{tpu_custom_call.1} parent=1 // pred_region
      %s14 = ssub.s32 128, 128
      %15 = vsyncadd [#allocation3], %s14
      %s17 = sshll.u32 [#allocation2], 4
      %s18 = int_to_ptr.vmem [resolvable:$true] %s17
      %20 = dma.hbm_to_vmem [thread:$0]  %s0, 128, %s18, [#allocation3]
    $region5: #{tpu_custom_call.1} parent=1 // pred_fallthru
      _
    // Predicated region
    $region6: #{tpu_custom_call.1} parent=1 // pred_check
      _
    $region7: #{tpu_custom_call.1} parent=1 // pred_check_branch
      %22 = sbr.rel (0) target = $region9
    $region8: #{tpu_custom_call.1} parent=1 // pred_region
      %s24 = ssub.s32 128, 128
      %25 = vsyncadd [#allocation6], %s24
      %s27 = sshll.u32 [#allocation5], 4
      %s28 = int_to_ptr.vmem [resolvable:$true] %s27
      %30 = dma.hbm_to_vmem [thread:$0]  %s1, 128, %s28, [#allocation6]
    $region9: #{tpu_custom_call.1} parent=1 // pred_fallthru
      _
    // Predicated region
    $region10: #{tpu_custom_call.1} parent=1 // pred_check
      _
    $region11: #{tpu_custom_call.1} parent=1 // pred_check_branch
      %32 = sbr.rel (0) target = $region13
    $region12: #{tpu_custom_call.1} parent=1 // pred_region
      %s34 = ssub.s32 128, 128
      %35 = vsyncadd [#allocation6], %s34
      %s37 = sshll.u32 [#allocation7], 4
      %s38 = int_to_ptr.vmem [resolvable:$true] %s37
      %40 = dma.hbm_to_vmem [thread:$0]  %s2, 128, %s38, [#allocation6]
    $region13: #{tpu_custom_call.1} parent=1 // pred_fallthru
      _
    // Predicated region
    $region14: #{tpu_custom_call.1} parent=1 // pred_check
      _
    $region15: #{tpu_custom_call.1} parent=1 // pred_check_branch
      %42 = sbr.rel (0) target = $region17
    $region16: #{tpu_custom_call.1} parent=1 // pred_region
      %43 = dma.done [#allocation3], 128
    $region17: #{tpu_custom_call.1} parent=1 // pred_fallthru
      _
    // Predicated region
    $region18: #{tpu_custom_call.1} parent=1 // pred_check
      _
    $region19: #{tpu_custom_call.1} parent=1 // pred_check_branch
      %45 = sbr.rel (0) target = $region21
    $region20: #{tpu_custom_call.1} parent=1 // pred_region
      %46 = dma.done [#allocation6], 128
    $region21: #{tpu_custom_call.1} parent=1 // pred_fallthru
      _
    // Predicated region
    $region22: #{tpu_custom_call.1} parent=1 // pred_check
      _
    $region23: #{tpu_custom_call.1} parent=1 // pred_check_branch
      %48 = sbr.rel (0) target = $region25
    $region24: #{tpu_custom_call.1} parent=1 // pred_region
      %49 = dma.done [#allocation6], 128
    $region25: #{tpu_custom_call.1} parent=1 // pred_fallthru
      _
    %v50 = vld [vmem:[#allocation2] sm:$0xff]
    %vm51 = vcmask 261120
    %52 = vst.msk [vmem:[#allocation8] sm:$0xff] %vm51, %v50
    %v53 = vld [vmem:[#allocation5] sm:$0xff]
    %55 = vrot.lane.b32.xlu0 %v53, 32
    %v56 = vpop.permute.xlu0 %55
    %vm58 = vcmask 523520
    %59 = vst.msk [vmem:[#allocation8] sm:$0xff] %vm58, %v56
    %v60 = vld [vmem:[#allocation7] sm:$0xff]
    %62 = vrot.lane.b32.xlu0 %v60, 64
    %v63 = vpop.permute.xlu0 %62
    %vm65 = vcmask 769536
    %66 = vst.msk [vmem:[#allocation8] sm:$0xff] %vm65, %v63
    // Predicated region
    $region26: #{tpu_custom_call.1} parent=1 // pred_check
      _
    $region27: #{tpu_custom_call.1} parent=1 // pred_check_branch
      %68 = sbr.rel (0) target = $region29
    $region28: #{tpu_custom_call.1} parent=1 // pred_region
      %s70 = ssub.s32 128, 128
      %71 = vsyncadd [#allocation4], %s70
      %s73 = sshll.u32 [#allocation8], 4
      %s74 = int_to_ptr.vmem [resolvable:$true] %s73
      %76 = dma.vmem_to_hbm [thread:$0]  %s74, 128, %s3, [#allocation4]
    $region29: #{tpu_custom_call.1} parent=1 // pred_fallthru
      _
    // Predicated region
    $region30: #{tpu_custom_call.1} parent=1 // pred_check
      _
    $region31: #{tpu_custom_call.1} parent=1 // pred_check_branch
      %78 = sbr.rel (0) target = $region33
    $region32: #{tpu_custom_call.1} parent=1 // pred_region
      %79 = dma.done [#allocation4], 128
    $region33: #{tpu_custom_call.1} parent=1 // pred_fallthru
      _
    %80 = vsyncpa [#allocation3], 1
    %81 = vsyncpa [#allocation6], 1
    %82 = vsyncpa [#allocation4], 1

</llo_original>
